<compile_context>
chip_gen: v7x
topology: tpu7x:2x2x1
jax: 0.10.0
libtpu: 0.0.40
codegen_flags: <defaults>
</compile_context>

<pallas_src>
import functools
import math

import jax
import jax.numpy as jnp
from jax import lax
from jax.experimental import pallas as pl
from jax.experimental.pallas import tpu as pltpu

_LANES = 128
_SUBLANES_F32 = 8
_SUBLANES_I8 = 32
_HALF_PI = math.pi / 2.0
_INV_PI = 1.0 / math.pi


def _cdiv(a, b):
    return -(-a // b)


def _round_up(x, m):
    return ((x + m - 1) // m) * m


def _tpu_geometry():
    """Returns (tensorcores_to_split_over, max_rows_per_block)."""
    ncores, max_rows = 1, 1024
    try:
        kind = jax.devices()[0].device_kind.lower().replace(" ", "")
    except Exception:
        return ncores, max_rows
    if "v7" in kind:
        ncores, max_rows = 2, 2048
    elif "v4" in kind or "v5p" in kind:
        ncores = 2
    return ncores, max_rows


def _snap(d):
    """(d + pi/2) floor-mod pi - pi/2, via multiply-by-1/pi (no divide)."""
    t = d + jnp.float32(_HALF_PI)
    t = t - jnp.float32(math.pi) * jnp.floor(t * jnp.float32(_INV_PI))
    return t - jnp.float32(_HALF_PI)


def _consistency_kernel(*refs, n, bpc, beta, use_snap_loss, has_mask):
    if has_mask:
        (po_ref, pr_ref, pf_ref, to_ref, tr_ref, msk_ref,
         out_ref, acc_rot, acc_flp) = refs
    else:
        po_ref, pr_ref, pf_ref, to_ref, tr_ref, out_ref, acc_rot, acc_flp = refs
        msk_ref = None

    p = pl.program_id(0)
    j = pl.program_id(1)
    rpb = po_ref.shape[0]

    @pl.when(j == 0)
    def _init():
        acc_rot[...] = jnp.zeros_like(acc_rot)
        acc_flp[...] = jnp.zeros_like(acc_flp)

    po = po_ref[...].astype(jnp.float32)
    pr = pr_ref[...].astype(jnp.float32)
    pf = pf_ref[...].astype(jnp.float32)
    to = to_ref[...].astype(jnp.float32)
    tr = tr_ref[...].astype(jnp.float32)

    d_rot = po - pr - (to - tr)
    d_flp = po + pf
    if use_snap_loss:
        d_rot = _snap(d_rot)
        d_flp = _snap(d_flp)
    if has_mask:
        m = msk_ref[...] != 0
        d_rot = jnp.where(m, jnp.float32(0.0), d_rot)
        d_flp = jnp.where(m, jnp.float32(0.0), d_flp)

    beta_f = jnp.float32(beta)
    inv_beta = jnp.float32(1.0 / beta)

    def smooth_l1(x):
        ax = jnp.abs(x)
        return jnp.where(ax < beta_f, 0.5 * ax * ax * inv_beta, ax - 0.5 * beta_f)

    # Validity mask against the true element count n: kills (a) the wrapper's
    # <= one-row-group zero pad, (b) Pallas-implicit (garbage) tail padding of
    # the last block, (c) logical blocks clamped onto the last valid block.
    blk = p * bpc + j                      # logical (unclamped) block id
    elem0 = blk * (rpb * _LANES)           # first flat element of this block
    rows = lax.broadcasted_iota(jnp.int32, (rpb, _LANES), 0)
    lanes = lax.broadcasted_iota(jnp.int32, (rpb, _LANES), 1)
    valid = (elem0 + rows * _LANES + lanes) < n

    zero = jnp.float32(0.0)
    # Elementwise (VALU-only) accumulation; cross-lane reduce deferred.
    acc_rot[...] += jnp.where(valid, smooth_l1(d_rot), zero)
    acc_flp[...] += jnp.where(valid, smooth_l1(d_flp), zero)

    @pl.when(j == pl.num_programs(1) - 1)
    def _finalize():
        out_ref[0, 0] = jnp.sum(acc_rot[...])
        out_ref[0, 1] = jnp.sum(acc_flp[...])


def h2rbox_v2_consistency_loss(pred_ori, pred_rot, pred_flp, target_ori,
                               target_rot, agnostic_mask=None, avg_factor=None,
                               reduction='mean', loss_weight_rot=1.0,
                               loss_weight_flp=0.05, beta=0.1,
                               use_snap_loss=True):
    # TODO(synk): reduction='none' (per-element loss output) is not implemented
    # in the kernel path; only 'mean' (module default) and 'sum'.
    assert reduction in ('mean', 'sum')

    n = int(pred_ori.size)                 # works for any input shape
    has_mask = agnostic_mask is not None

    ncores_hw, max_rows = _tpu_geometry()
    g = _SUBLANES_I8 if has_mask else _SUBLANES_F32   # int8 min tile is (32,128)

    rows_needed = max(1, _cdiv(n, _LANES))
    rows_padded = _round_up(rows_needed, g)           # pad <= g*128-1 elems only

    split = (ncores_hw == 2) and (rows_padded >= 2 * g)
    if split:
        rows_per_core = _round_up(_cdiv(rows_padded, 2), g)
        rpb = min(max_rows, rows_per_core)
        bpc = _cdiv(rows_per_core, rpb)
        ncores = 2
    else:
        rpb = min(max_rows, rows_padded)
        bpc = _cdiv(rows_padded, rpb)
        ncores = 1

    nblk_valid = _cdiv(rows_padded, rpb)   # blocks overlapping the real array

    def prep(x, force_dtype=None):
        x = x.reshape(-1)
        if force_dtype is not None:
            x = x.astype(force_dtype)
        elif x.dtype != jnp.float32 and x.dtype != jnp.bfloat16:
            x = x.astype(jnp.float32)      # bf16 passes through, upcast in-kernel
        pad = rows_padded * _LANES - n
        if pad:
            # TODO(synk): this small pad + reshape can still cost one HBM copy
            # per input when n is not tile-aligned; a fully pad-free path needs
            # rank-1 blocks, which do not lay out well in VMEM.
            x = jnp.pad(x, (0, pad))
        return x.reshape(rows_padded, _LANES)

    args = [prep(pred_ori), prep(pred_rot), prep(pred_flp),
            prep(target_ori), prep(target_rot)]
    if has_mask:
        args.append(prep(agnostic_mask, jnp.int8))

    def in_map(p, j):
        # Clamp logical blocks that fall entirely past the array onto the last
        # valid block (no OOB DMA); the in-kernel `elem < n` mask zeroes them.
        return (jnp.minimum(p * bpc + j, nblk_valid - 1), 0)

    in_specs = [pl.BlockSpec((rpb, _LANES), in_map) for _ in args]
    out_spec = pl.BlockSpec((1, 2), lambda p, j: (p, 0),
                            memory_space=pltpu.MemorySpace.SMEM)

    kernel = functools.partial(_consistency_kernel, n=n, bpc=bpc,
                               beta=float(beta),
                               use_snap_loss=bool(use_snap_loss),
                               has_mask=has_mask)

    bytes_in = sum(int(a.size) * a.dtype.itemsize for a in args)
    cost = pl.CostEstimate(flops=30 * rows_padded * _LANES, transcendentals=0,
                           bytes_accessed=bytes_in + 8 * ncores)

    partial_sums = pl.pallas_call(
        kernel,
        grid=(ncores, bpc),
        in_specs=in_specs,
        out_specs=out_spec,
        out_shape=jax.ShapeDtypeStruct((ncores, 2), jnp.float32),
        scratch_shapes=[pltpu.VMEM((rpb, _LANES), jnp.float32),
                        pltpu.VMEM((rpb, _LANES), jnp.float32)],
        compiler_params=pltpu.CompilerParams(
            dimension_semantics=("parallel", "arbitrary"),
            vmem_limit_bytes=32 * 1024 * 1024),
        cost_estimate=cost,
    )(*args)

    sums = jnp.sum(partial_sums, axis=0)   # (2,): [sum_rot, sum_flp]

    if reduction == 'mean':
        if avg_factor is None:
            denom = jnp.float32(n)
        else:
            denom = jnp.float32(avg_factor) + jnp.finfo(jnp.float32).eps
        loss_rot = loss_weight_rot * sums[0] / denom
        loss_flp = loss_weight_flp * sums[1] / denom
    else:  # 'sum'
        loss_rot = loss_weight_rot * sums[0]
        loss_flp = loss_weight_flp * sums[1]
    return loss_rot + loss_flp


def _reference(pred_ori, pred_rot, pred_flp, target_ori, target_rot,
               agnostic_mask=None, beta=0.1, use_snap_loss=True,
               loss_weight_rot=1.0, loss_weight_flp=0.05):
    d_rot = pred_ori - pred_rot - (target_ori - target_rot)
    d_flp = pred_ori + pred_flp
    if use_snap_loss:
        d_rot = jnp.mod(d_rot + jnp.pi / 2, jnp.pi) - jnp.pi / 2
        d_flp = jnp.mod(d_flp + jnp.pi / 2, jnp.pi) - jnp.pi / 2
    if agnostic_mask is not None:
        d_rot = jnp.where(agnostic_mask, 0.0, d_rot)
        d_flp = jnp.where(agnostic_mask, 0.0, d_flp)

    def sl1(x):
        ax = jnp.abs(x)
        return jnp.where(ax < beta, 0.5 * ax * ax / beta, ax - 0.5 * beta)

    return loss_weight_rot * sl1(d_rot).mean() + loss_weight_flp * sl1(d_flp).mean()


def _check(n, with_mask, key):
    k1, k2, k3, k4, k5, k6 = jax.random.split(key, 6)
    po = jax.random.uniform(k1, (n,), jnp.float32, -jnp.pi, jnp.pi)
    pr = jax.random.uniform(k2, (n,), jnp.float32, -jnp.pi, jnp.pi)
    pf = jax.random.uniform(k3, (n,), jnp.float32, -jnp.pi, jnp.pi)
    to = jax.random.uniform(k4, (n,), jnp.float32, -jnp.pi, jnp.pi)
    tr = jax.random.uniform(k5, (n,), jnp.float32, -jnp.pi, jnp.pi)
    mask = jax.random.bernoulli(k6, 0.2, (n,)) if with_mask else None

    out = h2rbox_v2_consistency_loss(po, pr, pf, to, tr, agnostic_mask=mask)
    out = jax.block_until_ready(out)
    ref = _reference(po, pr, pf, to, tr, agnostic_mask=mask)
    a, b = float(out), float(ref)
    assert abs(a - b) <= 1e-4 + 1e-3 * abs(b), (n, with_mask, a, b)


if __name__ == "__main__":
    key = jax.random.PRNGKey(0)
    k_a, k_b, k_c = jax.random.split(key, 3)

    # Small N, with int8 agnostic_mask stream.
    _check(50, True, k_a)
    # Small N, 5-input path (no mask traffic).
    _check(50, False, k_b)
    # Mid-size, non-tile-aligned N: exercises multi-block accumulation,
    # in-kernel tail masking and (on multi-TC chips) the 2-way core split.
    _check(140000, True, k_c)

    print("KERNEL_OK")
</pallas_src>

<mosaic_0001>
module attributes {stable_mosaic.version = 11 : i64} {
  func.func @_consistency_kernel(%arg0: i32, %arg1: i32, %arg2: memref<32x128xf32, #tpu.memory_space<vmem>>, %arg3: memref<32x128xf32, #tpu.memory_space<vmem>>, %arg4: memref<32x128xf32, #tpu.memory_space<vmem>>, %arg5: memref<32x128xf32, #tpu.memory_space<vmem>>, %arg6: memref<32x128xf32, #tpu.memory_space<vmem>>, %arg7: memref<32x128xi8, #tpu.memory_space<vmem>>, %arg8: memref<1x2xf32, #tpu.memory_space<smem>>, %arg9: memref<32x128xf32, #tpu.memory_space<vmem>>, %arg10: memref<32x128xf32, #tpu.memory_space<vmem>>) attributes {dimension_semantics = [#tpu.dimension_semantics<parallel>, #tpu.dimension_semantics<arbitrary>], iteration_bounds = array<i64: 1, 1>, scalar_prefetch = 0 : i64, scratch_operands = 2 : i64, tpu.core_type = #tpu.core_type<tc>, window_params = [{transform_indices = @transform_0, window_bounds = array<i64: 32, 128>}, {transform_indices = @transform_1, window_bounds = array<i64: 32, 128>}, {transform_indices = @transform_2, window_bounds = array<i64: 32, 128>}, {transform_indices = @transform_3, window_bounds = array<i64: 32, 128>}, {transform_indices = @transform_4, window_bounds = array<i64: 32, 128>}, {transform_indices = @transform_5, window_bounds = array<i64: 32, 128>}, {transform_indices = @transform_6, window_bounds = array<i64: 1, 2>}]} {
    %c0_i32 = arith.constant 0 : i32
    %0 = arith.cmpi eq, %arg1, %c0_i32 : i32
    %1 = arith.extui %0 : i1 to i32
    %c0_i32_0 = arith.constant 0 : i32
    %2 = arith.cmpi ne, %1, %c0_i32_0 : i32
    scf.if %2 {
      %cst_43 = arith.constant 0.000000e+00 : f32
      %88 = vector.broadcast %cst_43 : f32 to vector<32x128xf32>
      %c0_44 = arith.constant 0 : index
      %c0_45 = arith.constant 0 : index
      %89 = vector.load %arg9[%c0_44, %c0_45] : memref<32x128xf32, #tpu.memory_space<vmem>>, vector<32x128xf32>
      tpu.vector_store %arg9[%c0_44, %c0_45], %88 {strides = array<i32>} : memref<32x128xf32, #tpu.memory_space<vmem>>, vector<32x128xf32>,
      %cst_46 = arith.constant 0.000000e+00 : f32
      %90 = vector.broadcast %cst_46 : f32 to vector<32x128xf32>
      %c0_47 = arith.constant 0 : index
      %c0_48 = arith.constant 0 : index
      %91 = vector.load %arg10[%c0_47, %c0_48] : memref<32x128xf32, #tpu.memory_space<vmem>>, vector<32x128xf32>
      tpu.vector_store %arg10[%c0_47, %c0_48], %90 {strides = array<i32>} : memref<32x128xf32, #tpu.memory_space<vmem>>, vector<32x128xf32>,
    } else {
    }
    %c0 = arith.constant 0 : index
    %c0_1 = arith.constant 0 : index
    %3 = vector.load %arg2[%c0, %c0_1] : memref<32x128xf32, #tpu.memory_space<vmem>>, vector<32x128xf32>
    %c0_2 = arith.constant 0 : index
    %c0_3 = arith.constant 0 : index
    %4 = vector.load %arg3[%c0_2, %c0_3] : memref<32x128xf32, #tpu.memory_space<vmem>>, vector<32x128xf32>
    %c0_4 = arith.constant 0 : index
    %c0_5 = arith.constant 0 : index
    %5 = vector.load %arg4[%c0_4, %c0_5] : memref<32x128xf32, #tpu.memory_space<vmem>>, vector<32x128xf32>
    %c0_6 = arith.constant 0 : index
    %c0_7 = arith.constant 0 : index
    %6 = vector.load %arg5[%c0_6, %c0_7] : memref<32x128xf32, #tpu.memory_space<vmem>>, vector<32x128xf32>
    %c0_8 = arith.constant 0 : index
    %c0_9 = arith.constant 0 : index
    %7 = vector.load %arg6[%c0_8, %c0_9] : memref<32x128xf32, #tpu.memory_space<vmem>>, vector<32x128xf32>
    %8 = arith.subf %3, %4 : vector<32x128xf32>
    %9 = arith.subf %6, %7 : vector<32x128xf32>
    %10 = arith.subf %8, %9 : vector<32x128xf32>
    %11 = arith.addf %3, %5 : vector<32x128xf32>
    %cst = arith.constant 1.57079637 : f32
    %12 = vector.broadcast %cst : f32 to vector<32x128xf32>
    %13 = arith.addf %10, %12 : vector<32x128xf32>
    %cst_10 = arith.constant 0.318309873 : f32
    %14 = vector.broadcast %cst_10 : f32 to vector<32x128xf32>
    %15 = arith.mulf %13, %14 : vector<32x128xf32>
    %16 = math.floor %15 : vector<32x128xf32>
    %cst_11 = arith.constant 3.14159274 : f32
    %17 = vector.broadcast %cst_11 : f32 to vector<32x128xf32>
    %18 = arith.mulf %17, %16 : vector<32x128xf32>
    %19 = arith.subf %13, %18 : vector<32x128xf32>
    %cst_12 = arith.constant 1.57079637 : f32
    %20 = vector.broadcast %cst_12 : f32 to vector<32x128xf32>
    %21 = arith.subf %19, %20 : vector<32x128xf32>
    %cst_13 = arith.constant 1.57079637 : f32
    %22 = vector.broadcast %cst_13 : f32 to vector<32x128xf32>
    %23 = arith.addf %11, %22 : vector<32x128xf32>
    %cst_14 = arith.constant 0.318309873 : f32
    %24 = vector.broadcast %cst_14 : f32 to vector<32x128xf32>
    %25 = arith.mulf %23, %24 : vector<32x128xf32>
    %26 = math.floor %25 : vector<32x128xf32>
    %cst_15 = arith.constant 3.14159274 : f32
    %27 = vector.broadcast %cst_15 : f32 to vector<32x128xf32>
    %28 = arith.mulf %27, %26 : vector<32x128xf32>
    %29 = arith.subf %23, %28 : vector<32x128xf32>
    %cst_16 = arith.constant 1.57079637 : f32
    %30 = vector.broadcast %cst_16 : f32 to vector<32x128xf32>
    %31 = arith.subf %29, %30 : vector<32x128xf32>
    %c0_17 = arith.constant 0 : index
    %c0_18 = arith.constant 0 : index
    %32 = vector.load %arg7[%c0_17, %c0_18] : memref<32x128xi8, #tpu.memory_space<vmem>>, vector<32x128xi8>
    %c0_i8 = arith.constant 0 : i8
    %33 = vector.broadcast %c0_i8 : i8 to vector<32x128xi8>
    %34 = arith.cmpi ne, %32, %33 : vector<32x128xi8>
    %cst_19 = arith.constant 0.000000e+00 : f32
    %35 = vector.broadcast %cst_19 : f32 to vector<32x128xf32>
    %36 = arith.select %34, %35, %21 : vector<32x128xi1>, vector<32x128xf32>
    %cst_20 = arith.constant 0.000000e+00 : f32
    %37 = vector.broadcast %cst_20 : f32 to vector<32x128xf32>
    %38 = arith.select %34, %37, %31 : vector<32x128xi1>, vector<32x128xf32>
    %c1_i32 = arith.constant 1 : i32
    %39 = arith.muli %arg0, %c1_i32 : i32
    %40 = arith.addi %39, %arg1 : i32
    %c4096_i32 = arith.constant 4096 : i32
    %41 = arith.muli %40, %c4096_i32 : i32
    %42 = tpu.iota {dimensions = array<i32: 0>} : vector<32x128xi32>
    %43 = tpu.iota {dimensions = array<i32: 1>} : vector<32x128xi32>
    %c128_i32 = arith.constant 128 : i32
    %44 = vector.broadcast %c128_i32 : i32 to vector<32x128xi32>
    %45 = arith.muli %42, %44 : vector<32x128xi32>
    %46 = vector.broadcast %41 : i32 to vector<32x128xi32>
    %47 = arith.addi %46, %45 : vector<32x128xi32>
    %48 = arith.addi %47, %43 : vector<32x128xi32>
    %c50_i32 = arith.constant 50 : i32
    %49 = vector.broadcast %c50_i32 : i32 to vector<32x128xi32>
    %50 = arith.cmpi slt, %48, %49 : vector<32x128xi32>
    %c0_21 = arith.constant 0 : index
    %c0_22 = arith.constant 0 : index
    %51 = vector.load %arg9[%c0_21, %c0_22] : memref<32x128xf32, #tpu.memory_space<vmem>>, vector<32x128xf32>
    %52 = math.absf %36 : vector<32x128xf32>
    %cst_23 = arith.constant 1.000000e-01 : f32
    %53 = vector.broadcast %cst_23 : f32 to vector<32x128xf32>
    %54 = arith.cmpf olt, %52, %53 : vector<32x128xf32>
    %cst_24 = arith.constant 5.000000e-01 : f32
    %55 = vector.broadcast %cst_24 : f32 to vector<32x128xf32>
    %56 = arith.mulf %55, %52 : vector<32x128xf32>
    %57 = arith.mulf %56, %52 : vector<32x128xf32>
    %cst_25 = arith.constant 1.000000e+01 : f32
    %58 = vector.broadcast %cst_25 : f32 to vector<32x128xf32>
    %59 = arith.mulf %57, %58 : vector<32x128xf32>
    %cst_26 = arith.constant 5.000000e-01 : f32
    %cst_27 = arith.constant 1.000000e-01 : f32
    %60 = arith.mulf %cst_26, %cst_27 : f32
    %61 = vector.broadcast %60 : f32 to vector<32x128xf32>
    %62 = arith.subf %52, %61 : vector<32x128xf32>
    %63 = arith.select %54, %59, %62 : vector<32x128xi1>, vector<32x128xf32>
    %cst_28 = arith.constant 0.000000e+00 : f32
    %64 = vector.broadcast %cst_28 : f32 to vector<32x128xf32>
    %65 = arith.select %50, %63, %64 : vector<32x128xi1>, vector<32x128xf32>
    %66 = arith.addf %51, %65 : vector<32x128xf32>
    %c0_29 = arith.constant 0 : index
    %c0_30 = arith.constant 0 : index
    %67 = vector.load %arg9[%c0_29, %c0_30] : memref<32x128xf32, #tpu.memory_space<vmem>>, vector<32x128xf32>
    tpu.vector_store %arg9[%c0_29, %c0_30], %66 {strides = array<i32>} : memref<32x128xf32, #tpu.memory_space<vmem>>, vector<32x128xf32>,
    %c0_31 = arith.constant 0 : index
    %c0_32 = arith.constant 0 : index
    %68 = vector.load %arg10[%c0_31, %c0_32] : memref<32x128xf32, #tpu.memory_space<vmem>>, vector<32x128xf32>
    %69 = math.absf %38 : vector<32x128xf32>
    %cst_33 = arith.constant 1.000000e-01 : f32
    %70 = vector.broadcast %cst_33 : f32 to vector<32x128xf32>
    %71 = arith.cmpf olt, %69, %70 : vector<32x128xf32>
    %cst_34 = arith.constant 5.000000e-01 : f32
    %72 = vector.broadcast %cst_34 : f32 to vector<32x128xf32>
    %73 = arith.mulf %72, %69 : vector<32x128xf32>
    %74 = arith.mulf %73, %69 : vector<32x128xf32>
    %cst_35 = arith.constant 1.000000e+01 : f32
    %75 = vector.broadcast %cst_35 : f32 to vector<32x128xf32>
    %76 = arith.mulf %74, %75 : vector<32x128xf32>
    %cst_36 = arith.constant 5.000000e-01 : f32
    %cst_37 = arith.constant 1.000000e-01 : f32
    %77 = arith.mulf %cst_36, %cst_37 : f32
    %78 = vector.broadcast %77 : f32 to vector<32x128xf32>
    %79 = arith.subf %69, %78 : vector<32x128xf32>
    %80 = arith.select %71, %76, %79 : vector<32x128xi1>, vector<32x128xf32>
    %cst_38 = arith.constant 0.000000e+00 : f32
    %81 = vector.broadcast %cst_38 : f32 to vector<32x128xf32>
    %82 = arith.select %50, %80, %81 : vector<32x128xi1>, vector<32x128xf32>
    %83 = arith.addf %68, %82 : vector<32x128xf32>
    %c0_39 = arith.constant 0 : index
    %c0_40 = arith.constant 0 : index
    %84 = vector.load %arg10[%c0_39, %c0_40] : memref<32x128xf32, #tpu.memory_space<vmem>>, vector<32x128xf32>
    tpu.vector_store %arg10[%c0_39, %c0_40], %83 {strides = array<i32>} : memref<32x128xf32, #tpu.memory_space<vmem>>, vector<32x128xf32>,
    %c0_i32_41 = arith.constant 0 : i32
    %85 = arith.cmpi eq, %arg1, %c0_i32_41 : i32
    %86 = arith.extui %85 : i1 to i32
    %c0_i32_42 = arith.constant 0 : i32
    %87 = arith.cmpi ne, %86, %c0_i32_42 : i32
    scf.if %87 {
      %c0_43 = arith.constant 0 : index
      %c0_44 = arith.constant 0 : index
      %88 = vector.load %arg9[%c0_43, %c0_44] : memref<32x128xf32, #tpu.memory_space<vmem>>, vector<32x128xf32>
      %89 = vector.shape_cast %88 : vector<32x128xf32> to vector<1x32x128xf32>
      %cst_45 = arith.constant dense<0.000000e+00> : vector<1xf32>
      %90 = vector.multi_reduction <add>, %89, %cst_45 [1, 2] : vector<1x32x128xf32> to vector<1xf32>
      %91 = vector.shape_cast %90 : vector<1xf32> to vector<1x1x1xf32>
      %92 = vector.extract %91[0, 0, 0] : f32 from vector<1x1x1xf32>
      %c0_46 = arith.constant 0 : index
      %c0_47 = arith.constant 0 : index
      %93 = memref.load %arg8[%c0_46, %c0_47] : memref<1x2xf32, #tpu.memory_space<smem>>
      memref.store %92, %arg8[%c0_46, %c0_47] : memref<1x2xf32, #tpu.memory_space<smem>>
      %c0_48 = arith.constant 0 : index
      %c0_49 = arith.constant 0 : index
      %94 = vector.load %arg10[%c0_48, %c0_49] : memref<32x128xf32, #tpu.memory_space<vmem>>, vector<32x128xf32>
      %95 = vector.shape_cast %94 : vector<32x128xf32> to vector<1x32x128xf32>
      %cst_50 = arith.constant dense<0.000000e+00> : vector<1xf32>
      %96 = vector.multi_reduction <add>, %95, %cst_50 [1, 2] : vector<1x32x128xf32> to vector<1xf32>
      %97 = vector.shape_cast %96 : vector<1xf32> to vector<1x1x1xf32>
      %98 = vector.extract %97[0, 0, 0] : f32 from vector<1x1x1xf32>
      %c0_51 = arith.constant 0 : index
      %c1 = arith.constant 1 : index
      %99 = memref.load %arg8[%c0_51, %c1] : memref<1x2xf32, #tpu.memory_space<smem>>
      memref.store %98, %arg8[%c0_51, %c1] : memref<1x2xf32, #tpu.memory_space<smem>>
    } else {
    }
    return
  }
  func.func @transform_0(%arg0: i32, %arg1: i32) -> (i32, i32) {
    %c1_i32 = arith.constant 1 : i32
    %0 = arith.muli %arg0, %c1_i32 : i32
    %1 = arith.addi %0, %arg1 : i32
    %c0_i32 = arith.constant 0 : i32
    %2 = arith.minsi %1, %c0_i32 : i32
    %c0_i32_0 = arith.constant 0 : i32
    %c0_i32_1 = arith.constant 0 : i32
    return %2, %c0_i32_0 : i32, i32
  }
  func.func @transform_1(%arg0: i32, %arg1: i32) -> (i32, i32) {
    %c1_i32 = arith.constant 1 : i32
    %0 = arith.muli %arg0, %c1_i32 : i32
    %1 = arith.addi %0, %arg1 : i32
    %c0_i32 = arith.constant 0 : i32
    %2 = arith.minsi %1, %c0_i32 : i32
    %c0_i32_0 = arith.constant 0 : i32
    %c0_i32_1 = arith.constant 0 : i32
    return %2, %c0_i32_0 : i32, i32
  }
  func.func @transform_2(%arg0: i32, %arg1: i32) -> (i32, i32) {
    %c1_i32 = arith.constant 1 : i32
    %0 = arith.muli %arg0, %c1_i32 : i32
    %1 = arith.addi %0, %arg1 : i32
    %c0_i32 = arith.constant 0 : i32
    %2 = arith.minsi %1, %c0_i32 : i32
    %c0_i32_0 = arith.constant 0 : i32
    %c0_i32_1 = arith.constant 0 : i32
    return %2, %c0_i32_0 : i32, i32
  }
  func.func @transform_3(%arg0: i32, %arg1: i32) -> (i32, i32) {
    %c1_i32 = arith.constant 1 : i32
    %0 = arith.muli %arg0, %c1_i32 : i32
    %1 = arith.addi %0, %arg1 : i32
    %c0_i32 = arith.constant 0 : i32
    %2 = arith.minsi %1, %c0_i32 : i32
    %c0_i32_0 = arith.constant 0 : i32
    %c0_i32_1 = arith.constant 0 : i32
    return %2, %c0_i32_0 : i32, i32
  }
  func.func @transform_4(%arg0: i32, %arg1: i32) -> (i32, i32) {
    %c1_i32 = arith.constant 1 : i32
    %0 = arith.muli %arg0, %c1_i32 : i32
    %1 = arith.addi %0, %arg1 : i32
    %c0_i32 = arith.constant 0 : i32
    %2 = arith.minsi %1, %c0_i32 : i32
    %c0_i32_0 = arith.constant 0 : i32
    %c0_i32_1 = arith.constant 0 : i32
    return %2, %c0_i32_0 : i32, i32
  }
  func.func @transform_5(%arg0: i32, %arg1: i32) -> (i32, i32) {
    %c1_i32 = arith.constant 1 : i32
    %0 = arith.muli %arg0, %c1_i32 : i32
    %1 = arith.addi %0, %arg1 : i32
    %c0_i32 = arith.constant 0 : i32
    %2 = arith.minsi %1, %c0_i32 : i32
    %c0_i32_0 = arith.constant 0 : i32
    %c0_i32_1 = arith.constant 0 : i32
    return %2, %c0_i32_0 : i32, i32
  }
  func.func @transform_6(%arg0: i32, %arg1: i32) -> (i32, i32) {
    %c0_i32 = arith.constant 0 : i32
    %c0_i32_0 = arith.constant 0 : i32
    return %arg0, %c0_i32 : i32, i32
  }
}

</mosaic_0001>

<llo_original>
// kernel: tpu_custom_call.1
$region0: #{tpu_custom_call.1}
  #allocation0 [shape = 'u32[]', space=smem, size = 0x4, offset = 0x4, fixed_abs, tag = 'smem constant byte address 0x4 - core index']
  #allocation1 [shape = 'u32[144,128]{1,0:T(1,128)}', space=vmem, size = 0x12000, scoped, tag = 'internal scratch']
  #allocation2 [shape = 'f32[32,128]{1,0:T(8,128)}', space=vmem, size = 0x4000, scoped, tag = 'scratch operand']
  #allocation3 [shape = 'f32[32,128]{1,0:T(8,128)}', space=vmem, size = 0x4000, scoped, tag = 'scratch operand']
  %s0 = inlined_call_operand.hbm [shape: f32[32,128], index: 0, kind: input, shape index: {}]
  %s1 = inlined_call_operand.hbm [shape: f32[32,128], index: 1, kind: input, shape index: {}]
  %s2 = inlined_call_operand.hbm [shape: f32[32,128], index: 2, kind: input, shape index: {}]
  %s3 = inlined_call_operand.hbm [shape: f32[32,128], index: 3, kind: input, shape index: {}]
  %s4 = inlined_call_operand.hbm [shape: f32[32,128], index: 4, kind: input, shape index: {}]
  %s5 = inlined_call_operand.vmem [shape: s8[32,128], index: 5, kind: input, shape index: {}]
  %s6 = inlined_call_operand.hbm [shape: f32[1,2], index: 6, kind: output, shape index: {}]
  %s7 = sld [smem:[#allocation0]]
  $region62: #{tpu_custom_call.1} parent=0
    _
  %s9 = ssub.s32 1, %s7
  %s10 = scalar_select 0, %s9, %s7
  $region1: #{tpu_custom_call.1} parent=0
    #allocation4 [shape = 'u8[16384]{0}', space=vmem, size = 0x4000, scoped, tag = 'input window, operand 0, single buffered']
    #allocation5 [shape = 's32[1]{0}', space=sflag, size = 0x4, scoped, tag = 'scoped memory for tpu_custom_call.1']
    #allocation6 [shape = 's32[1]{0}', space=sflag, size = 0x4, scoped, tag = 'scoped memory for tpu_custom_call.1']
    #allocation7 [shape = 'u8[16384]{0}', space=vmem, size = 0x4000, scoped, tag = 'input window, operand 1, single buffered']
    #allocation8 [shape = 's32[1]{0}', space=sflag, size = 0x4, scoped, tag = 'scoped memory for tpu_custom_call.1']
    #allocation9 [shape = 'u8[16384]{0}', space=vmem, size = 0x4000, scoped, tag = 'input window, operand 2, single buffered']
    #allocation10 [shape = 'u8[16384]{0}', space=vmem, size = 0x4000, scoped, tag = 'input window, operand 3, single buffered']
    #allocation11 [shape = 's32[1]{0}', space=sflag, size = 0x4, scoped, tag = 'scoped memory for tpu_custom_call.1']
    #allocation12 [shape = 'u8[16384]{0}', space=vmem, size = 0x4000, scoped, tag = 'input window, operand 4, single buffered']
    #allocation13 [shape = 'u8[512]{0}', space=smem, size = 0x200, scoped, tag = 'output window, operand 0, single buffered']
    %11 = vsyncpa [#allocation5], 0
    %12 = vsyncpa [#allocation8], 0
    %13 = vsyncpa [#allocation11], 0
    %14 = vsyncpa [#allocation6], 0
    // Predicated region
    $region2: #{tpu_custom_call.1} parent=1 // pred_check
      _
    $region3: #{tpu_custom_call.1} parent=1 // pred_check_branch
      %16 = sbr.rel (0) target = $region5
    $region4: #{tpu_custom_call.1} parent=1 // pred_region
      %s17 = sadd.s32 0, 0
      %p18 = scmp.lt.s32.totalorder %s17, 0
      %s19 = scalar_select %p18, %s17, 0
      %s20 = smul.u32 4, %s19
      %s22 = ssub.s32 512, 512
      %23 = vsyncadd [#allocation5], %s22
      %s24 = smul.addr %s20, 128
      %s25 = scalar_lea.hbm %s0, %s24
      %s26 = sshll.u32 [#allocation4], 4
      %s27 = int_to_ptr.vmem [resolvable:$true] %s26
      %32 = dma.hbm_to_vmem [thread:$0]  %s25, 512, %s27, [#allocation5], 128, 128, 8
    $region5: #{tpu_custom_call.1} parent=1 // pred_fallthru
      _
    // Predicated region
    $region6: #{tpu_custom_call.1} parent=1 // pred_check
      _
    $region7: #{tpu_custom_call.1} parent=1 // pred_check_branch
      %34 = sbr.rel (0) target = $region9
    $region8: #{tpu_custom_call.1} parent=1 // pred_region
      %s35 = sadd.s32 0, 0
      %p36 = scmp.lt.s32.totalorder %s35, 0
      %s37 = scalar_select %p36, %s35, 0
      %s38 = smul.u32 4, %s37
      %s40 = ssub.s32 512, 512
      %41 = vsyncadd [#allocation8], %s40
      %s42 = smul.addr %s38, 128
      %s43 = scalar_lea.hbm %s1, %s42
      %s44 = sshll.u32 [#allocation7], 4
      %s45 = int_to_ptr.vmem [resolvable:$true] %s44
      %50 = dma.hbm_to_vmem [thread:$0]  %s43, 512, %s45, [#allocation8], 128, 128, 8
    $region9: #{tpu_custom_call.1} parent=1 // pred_fallthru
      _
    // Predicated region
    $region10: #{tpu_custom_call.1} parent=1 // pred_check
      _
    $region11: #{tpu_custom_call.1} parent=1 // pred_check_branch
      %52 = sbr.rel (0) target = $region13
    $region12: #{tpu_custom_call.1} parent=1 // pred_region
      %s53 = sadd.s32 0, 0
      %p54 = scmp.lt.s32.totalorder %s53, 0
      %s55 = scalar_select %p54, %s53, 0
      %s56 = smul.u32 4, %s55
      %s58 = ssub.s32 512, 512
      %59 = vsyncadd [#allocation8], %s58
      %s60 = smul.addr %s56, 128
      %s61 = scalar_lea.hbm %s2, %s60
      %s62 = sshll.u32 [#allocation9], 4
      %s63 = int_to_ptr.vmem [resolvable:$true] %s62
      %68 = dma.hbm_to_vmem [thread:$0]  %s61, 512, %s63, [#allocation8], 128, 128, 8
    $region13: #{tpu_custom_call.1} parent=1 // pred_fallthru
      _
    // Predicated region
    $region14: #{tpu_custom_call.1} parent=1 // pred_check
      _
    $region15: #{tpu_custom_call.1} parent=1 // pred_check_branch
      %70 = sbr.rel (0) target = $region17
    $region16: #{tpu_custom_call.1} parent=1 // pred_region
      %s71 = sadd.s32 0, 0
      %p72 = scmp.lt.s32.totalorder %s71, 0
      %s73 = scalar_select %p72, %s71, 0
      %s74 = smul.u32 4, %s73
      %s76 = ssub.s32 512, 512
      %77 = vsyncadd [#allocation11], %s76
      %s78 = smul.addr %s74, 128
      %s79 = scalar_lea.hbm %s3, %s78
      %s80 = sshll.u32 [#allocation10], 4
      %s81 = int_to_ptr.vmem [resolvable:$true] %s80
      %86 = dma.hbm_to_vmem [thread:$0]  %s79, 512, %s81, [#allocation11], 128, 128, 8
    $region17: #{tpu_custom_call.1} parent=1 // pred_fallthru
      _
    // Predicated region
    $region18: #{tpu_custom_call.1} parent=1 // pred_check
      _
    $region19: #{tpu_custom_call.1} parent=1 // pred_check_branch
      %88 = sbr.rel (0) target = $region21
    $region20: #{tpu_custom_call.1} parent=1 // pred_region
      %s89 = sadd.s32 0, 0
      %p90 = scmp.lt.s32.totalorder %s89, 0
      %s91 = scalar_select %p90, %s89, 0
      %s92 = smul.u32 4, %s91
      %s94 = ssub.s32 512, 512
      %95 = vsyncadd [#allocation11], %s94
      %s96 = smul.addr %s92, 128
      %s97 = scalar_lea.hbm %s4, %s96
      %s98 = sshll.u32 [#allocation12], 4
      %s99 = int_to_ptr.vmem [resolvable:$true] %s98
      %104 = dma.hbm_to_vmem [thread:$0]  %s97, 512, %s99, [#allocation11], 128, 128, 8
    $region21: #{tpu_custom_call.1} parent=1 // pred_fallthru
      _
    // Predicated region
    $region22: #{tpu_custom_call.1} parent=1 // pred_check
      _
    $region23: #{tpu_custom_call.1} parent=1 // pred_check_branch
      %106 = sbr.rel (0) target = $region25
    $region24: #{tpu_custom_call.1} parent=1 // pred_region
      %s107 = sadd.s32 0, 0
      %p108 = scmp.lt.s32.totalorder %s107, 0
      %s109 = scalar_select %p108, %s107, 0
      %p110 = scmp.lt.s32.totalorder %s109, 0
      %s111 = scalar_select %p110, %s109, 0
      %s112 = smul.addr %s111, 8
      %s113 = scalar_lea.vmem %s5, %s112
      %s114 = sadd.s32 0, 0
      %p115 = scmp.lt.s32.totalorder %s114, 0
      %s116 = scalar_select %p115, %s114, 0
    $region25: #{tpu_custom_call.1} parent=1 // pred_fallthru
      _
    // Predicated region
    $region26: #{tpu_custom_call.1} parent=1 // pred_check
      _
    $region27: #{tpu_custom_call.1} parent=1 // pred_check_branch
      %118 = sbr.rel (0) target = $region29
    $region28: #{tpu_custom_call.1} parent=1 // pred_region
      %119 = dma.done [#allocation5], 512
    $region29: #{tpu_custom_call.1} parent=1 // pred_fallthru
      _
    // Predicated region
    $region30: #{tpu_custom_call.1} parent=1 // pred_check
      _
    $region31: #{tpu_custom_call.1} parent=1 // pred_check_branch
      %121 = sbr.rel (0) target = $region33
    $region32: #{tpu_custom_call.1} parent=1 // pred_region
      %122 = dma.done [#allocation8], 512
    $region33: #{tpu_custom_call.1} parent=1 // pred_fallthru
      _
    // Predicated region
    $region34: #{tpu_custom_call.1} parent=1 // pred_check
      _
    $region35: #{tpu_custom_call.1} parent=1 // pred_check_branch
      %124 = sbr.rel (0) target = $region37
    $region36: #{tpu_custom_call.1} parent=1 // pred_region
      %125 = dma.done [#allocation8], 512
    $region37: #{tpu_custom_call.1} parent=1 // pred_fallthru
      _
    // Predicated region
    $region38: #{tpu_custom_call.1} parent=1 // pred_check
      _
    $region39: #{tpu_custom_call.1} parent=1 // pred_check_branch
      %127 = sbr.rel (0) target = $region41
    $region40: #{tpu_custom_call.1} parent=1 // pred_region
      %128 = dma.done [#allocation11], 512
    $region41: #{tpu_custom_call.1} parent=1 // pred_fallthru
      _
    // Predicated region
    $region42: #{tpu_custom_call.1} parent=1 // pred_check
      _
    $region43: #{tpu_custom_call.1} parent=1 // pred_check_branch
      %130 = sbr.rel (0) target = $region45
    $region44: #{tpu_custom_call.1} parent=1 // pred_region
      %131 = dma.done [#allocation11], 512
    $region45: #{tpu_custom_call.1} parent=1 // pred_fallthru
      _
    %s132 = sadd.s32 0, 0
    %p133 = scmp.lt.s32.totalorder %s132, 0
    %s134 = scalar_select %p133, %s132, 0
    %p135 = scmp.lt.s32.totalorder %s134, 0
    %s136 = scalar_select %p135, %s134, 0
    %s137 = smul.addr %s136, 8
    %s138 = scalar_lea.vmem %s5, %s137
    %s139 = sadd.s32 0, 0
    %p140 = scmp.lt.s32.totalorder %s139, 0
    %s141 = scalar_select %p140, %s139, 0
    %s142 = smul.u32 4, %s141
    %s143 = sadd.s32 0, 0
    %p144 = scmp.lt.s32.totalorder %s143, 0
    %s145 = scalar_select %p144, %s143, 0
    %s146 = smul.u32 4, %s145
    %s147 = sadd.s32 0, 0
    %p148 = scmp.lt.s32.totalorder %s147, 0
    %s149 = scalar_select %p148, %s147, 0
    %s150 = smul.u32 4, %s149
    %s151 = sadd.s32 0, 0
    %p152 = scmp.lt.s32.totalorder %s151, 0
    %s153 = scalar_select %p152, %s151, 0
    %s154 = smul.u32 4, %s153
    %s155 = sadd.s32 0, 0
    %p156 = scmp.lt.s32.totalorder %s155, 0
    %s157 = scalar_select %p156, %s155, 0
    %s158 = smul.u32 4, %s157
    %s159 = sadd.s32 0, 0
    %p160 = scmp.lt.s32.totalorder %s159, 0
    %s161 = scalar_select %p160, %s159, 0
    %p162 = scmp.lt.s32.totalorder %s161, 0
    %s163 = scalar_select %p162, %s161, 0
    %s164 = smul.addr %s163, 8
    %s165 = scalar_lea.vmem %s5, %s164
    %s166 = sadd.s32 0, 0
    %p167 = scmp.lt.s32.totalorder %s166, 0
    %s168 = scalar_select %p167, %s166, 0
    %p171 = scmp.eq.s32.totalorder 0, 0
    // Predicated region
    $region46: #{tpu_custom_call.1} parent=1 // pred_check
      %p172 = pneg %p171
    $region47: #{tpu_custom_call.1} parent=1 // pred_check_branch
      %174 = sbr.rel (%p172) target = $region49
    $region48: #{tpu_custom_call.1} parent=1 // pred_region
      %175 = vst [vmem:[#allocation2] sm:$0xff] 0.0
      %176 = vst [vmem:[#allocation2 + $0x8] sm:$0xff] 0.0
      %177 = vst [vmem:[#allocation2 + $0x10] sm:$0xff] 0.0
      %178 = vst [vmem:[#allocation2 + $0x18] sm:$0xff] 0.0
      %179 = vst [vmem:[#allocation3] sm:$0xff] 0.0
      %180 = vst [vmem:[#allocation3 + $0x8] sm:$0xff] 0.0
      %181 = vst [vmem:[#allocation3 + $0x10] sm:$0xff] 0.0
      %182 = vst [vmem:[#allocation3 + $0x18] sm:$0xff] 0.0
    $region49: #{tpu_custom_call.1} parent=1 // pred_fallthru
      _
    %v183 = vld [vmem:[#allocation4] sm:$0xff]
    %v184 = vld [vmem:[#allocation4 + $0x8] sm:$0xff]
    %v185 = vld [vmem:[#allocation4 + $0x10] sm:$0xff]
    %v186 = vld [vmem:[#allocation4 + $0x18] sm:$0xff]
    %v187 = vld [vmem:[#allocation7] sm:$0xff]
    %v188 = vld [vmem:[#allocation7 + $0x8] sm:$0xff]
    %v189 = vld [vmem:[#allocation7 + $0x10] sm:$0xff]
    %v190 = vld [vmem:[#allocation7 + $0x18] sm:$0xff]
    %v191 = vld [vmem:[#allocation9] sm:$0xff]
    %v192 = vld [vmem:[#allocation9 + $0x8] sm:$0xff]
    %v193 = vld [vmem:[#allocation9 + $0x10] sm:$0xff]
    %v194 = vld [vmem:[#allocation9 + $0x18] sm:$0xff]
    %v195 = vld [vmem:[#allocation10] sm:$0xff]
    %v196 = vld [vmem:[#allocation10 + $0x8] sm:$0xff]
    %v197 = vld [vmem:[#allocation10 + $0x10] sm:$0xff]
    %v198 = vld [vmem:[#allocation10 + $0x18] sm:$0xff]
    %v199 = vld [vmem:[#allocation12] sm:$0xff]
    %v200 = vld [vmem:[#allocation12 + $0x8] sm:$0xff]
    %v201 = vld [vmem:[#allocation12 + $0x10] sm:$0xff]
    %v202 = vld [vmem:[#allocation12 + $0x18] sm:$0xff]
    %v203 = vsub.f32 %v183, %v187
    %v204 = vsub.f32 %v184, %v188
    %v205 = vsub.f32 %v185, %v189
    %v206 = vsub.f32 %v186, %v190
    %v207 = vsub.f32 %v195, %v199
    %v208 = vsub.f32 %v196, %v200
    %v209 = vsub.f32 %v197, %v201
    %v210 = vsub.f32 %v198, %v202
    %v211 = vsub.f32 %v203, %v207
    %v212 = vsub.f32 %v204, %v208
    %v213 = vsub.f32 %v205, %v209
    %v214 = vsub.f32 %v206, %v210
    %v215 = vadd.f32 %v183, %v191
    %v216 = vadd.f32 %v184, %v192
    %v217 = vadd.f32 %v185, %v193
    %v218 = vadd.f32 %v186, %v194
    %v219 = vadd.f32 %v211, 1.5707964
    %v220 = vadd.f32 %v212, 1.5707964
    %v221 = vadd.f32 %v213, 1.5707964
    %v222 = vadd.f32 %v214, 1.5707964
    %v223 = vmul.f32 %v219, 0.31830987
    %v224 = vmul.f32 %v220, 0.31830987
    %v225 = vmul.f32 %v221, 0.31830987
    %v226 = vmul.f32 %v222, 0.31830987
    %v227 = vfloor.f32 %v223
    %v228 = vfloor.f32 %v224
    %v229 = vfloor.f32 %v225
    %v230 = vfloor.f32 %v226
    %v231 = vmul.f32 %v227, 3.1415927
    %v232 = vmul.f32 %v228, 3.1415927
    %v233 = vmul.f32 %v229, 3.1415927
    %v234 = vmul.f32 %v230, 3.1415927
    %v235 = vsub.f32 %v219, %v231
    %v236 = vsub.f32 %v220, %v232
    %v237 = vsub.f32 %v221, %v233
    %v238 = vsub.f32 %v222, %v234
    %v239 = vsub.f32 %v235, 1.5707964
    %v240 = vsub.f32 %v236, 1.5707964
    %v241 = vsub.f32 %v237, 1.5707964
    %v242 = vsub.f32 %v238, 1.5707964
    %v243 = vadd.f32 %v215, 1.5707964
    %v244 = vadd.f32 %v216, 1.5707964
    %v245 = vadd.f32 %v217, 1.5707964
    %v246 = vadd.f32 %v218, 1.5707964
    %v247 = vmul.f32 %v243, 0.31830987
    %v248 = vmul.f32 %v244, 0.31830987
    %v249 = vmul.f32 %v245, 0.31830987
    %v250 = vmul.f32 %v246, 0.31830987
    %v251 = vfloor.f32 %v247
    %v252 = vfloor.f32 %v248
    %v253 = vfloor.f32 %v249
    %v254 = vfloor.f32 %v250
    %v255 = vmul.f32 %v251, 3.1415927
    %v256 = vmul.f32 %v252, 3.1415927
    %v257 = vmul.f32 %v253, 3.1415927
    %v258 = vmul.f32 %v254, 3.1415927
    %v259 = vsub.f32 %v243, %v255
    %v260 = vsub.f32 %v244, %v256
    %v261 = vsub.f32 %v245, %v257
    %v262 = vsub.f32 %v246, %v258
    %v263 = vsub.f32 %v259, 1.5707964
    %v264 = vsub.f32 %v260, 1.5707964
    %v265 = vsub.f32 %v261, 1.5707964
    %v266 = vsub.f32 %v262, 1.5707964
    %v267 = vld [vmem:[%s165] sm:$0xff]
    %vm268 = vnez %v267
    %v269 = vsel %vm268, 16843009, 0
    %v270 = vunpack.c.0.s8 %v269
    %v271 = vunpack.c.1.s8 %v269
    %v272 = vunpack.c.2.s8 %v269
    %v273 = vunpack.c.3.s8 %v269
    %v274 = vpack.c.b16 %v270, %v270
    %v275 = vpack.c.b8 %v274, %v274
    %v276 = vpack.c.b16 %v271, %v271
    %v277 = vpack.c.b8 %v276, %v276
    %v278 = vpack.c.b16 %v272, %v272
    %v279 = vpack.c.b8 %v278, %v278
    %v280 = vpack.c.b16 %v273, %v273
    %v281 = vpack.c.b8 %v280, %v280
    %vm282 = vnez %v275
    %vm283 = vnez %v277
    %vm284 = vnez %v279
    %vm285 = vnez %v281
    %v286 = vsel %vm282, 16843009, 0
    %v287 = vsel %vm283, 16843009, 0
    %v288 = vsel %vm284, 16843009, 0
    %v289 = vsel %vm285, 16843009, 0
    %v290 = vunpack.c.0.s8 %v286
    %v291 = vunpack.c.0.s8 %v287
    %v292 = vunpack.c.0.s8 %v288
    %v293 = vunpack.c.0.s8 %v289
    %vm294 = vcmp.ne.s32.totalorder %v290, 0
    %vm295 = vcmp.ne.s32.totalorder %v291, 0
    %vm296 = vcmp.ne.s32.totalorder %v292, 0
    %vm297 = vcmp.ne.s32.totalorder %v293, 0
    %v298 = vsel %vm294, 0.0, %v239
    %v299 = vsel %vm295, 0.0, %v240
    %v300 = vsel %vm296, 0.0, %v241
    %v301 = vsel %vm297, 0.0, %v242
    %v302 = vsel %vm294, 0.0, %v263
    %v303 = vsel %vm295, 0.0, %v264
    %v304 = vsel %vm296, 0.0, %v265
    %v305 = vsel %vm297, 0.0, %v266
    %s306 = sadd.s32 0, 0
    %s307 = smul.u32 %s306, 4096
    %v308 = vlaneseq
    %v309 = vshrl.u32 %v308, 7
    %v310 = vadd.s32 %v309, 8
    %v311 = vadd.s32 %v309, 16
    %v312 = vadd.s32 %v309, 24
    %v313 = vlaneseq
    %v314 = vand.u32 %v313, 127
    %v315 = vmul.u32 %v309, 128
    %v316 = vmul.u32 %v310, 128
    %v317 = vmul.u32 %v311, 128
    %v318 = vmul.u32 %v312, 128
    %v319 = vstv %s307
    %v320 = vadd.s32 %v319, %v315
    %v321 = vadd.s32 %v319, %v316
    %v322 = vadd.s32 %v319, %v317
    %v323 = vadd.s32 %v319, %v318
    %v324 = vadd.s32 %v320, %v314
    %v325 = vadd.s32 %v321, %v314
    %v326 = vadd.s32 %v322, %v314
    %v327 = vadd.s32 %v323, %v314
    %vm328 = vcmp.lt.s32.totalorder %v324, 50
    %vm329 = vcmp.lt.s32.totalorder %v325, 50
    %vm330 = vcmp.lt.s32.totalorder %v326, 50
    %vm331 = vcmp.lt.s32.totalorder %v327, 50
    %v332 = vld [vmem:[#allocation2] sm:$0xff]
    %v333 = vld [vmem:[#allocation2 + $0x8] sm:$0xff]
    %v334 = vld [vmem:[#allocation2 + $0x10] sm:$0xff]
    %v335 = vld [vmem:[#allocation2 + $0x18] sm:$0xff]
    %v336 = vand.u32 2147483647, %v298
    %v337 = vand.u32 2147483647, %v299
    %v338 = vand.u32 2147483647, %v300
    %v339 = vand.u32 2147483647, %v301
    %vm340 = vcmp.lt.f32.partialorder %v336, 0.1
    %vm341 = vcmp.lt.f32.partialorder %v337, 0.1
    %vm342 = vcmp.lt.f32.partialorder %v338, 0.1
    %vm343 = vcmp.lt.f32.partialorder %v339, 0.1
    %v344 = vmul.f32 %v336, 0.5
    %v345 = vmul.f32 %v337, 0.5
    %v346 = vmul.f32 %v338, 0.5
    %v347 = vmul.f32 %v339, 0.5
    %v348 = vmul.f32 %v344, %v336
    %v349 = vmul.f32 %v345, %v337
    %v350 = vmul.f32 %v346, %v338
    %v351 = vmul.f32 %v347, %v339
    %v352 = vmul.f32 %v348, 10.0
    %v353 = vmul.f32 %v349, 10.0
    %v354 = vmul.f32 %v350, 10.0
    %v355 = vmul.f32 %v351, 10.0
    %v356 = vsub.f32 %v336, 0.05
    %v357 = vsub.f32 %v337, 0.05
    %v358 = vsub.f32 %v338, 0.05
    %v359 = vsub.f32 %v339, 0.05
    %v360 = vsel %vm340, %v352, %v356
    %v361 = vsel %vm341, %v353, %v357
    %v362 = vsel %vm342, %v354, %v358
    %v363 = vsel %vm343, %v355, %v359
    %v364 = vsel %vm328, %v360, 0.0
    %v365 = vsel %vm329, %v361, 0.0
    %v366 = vsel %vm330, %v362, 0.0
    %v367 = vsel %vm331, %v363, 0.0
    %v368 = vadd.f32 %v332, %v364
    %v369 = vadd.f32 %v333, %v365
    %v370 = vadd.f32 %v334, %v366
    %v371 = vadd.f32 %v335, %v367
    %372 = vst [vmem:[#allocation2] sm:$0xff] %v368
    %373 = vst [vmem:[#allocation2 + $0x8] sm:$0xff] %v369
    %374 = vst [vmem:[#allocation2 + $0x10] sm:$0xff] %v370
    %375 = vst [vmem:[#allocation2 + $0x18] sm:$0xff] %v371
    %v376 = vld [vmem:[#allocation3] sm:$0xff]
    %v377 = vld [vmem:[#allocation3 + $0x8] sm:$0xff]
    %v378 = vld [vmem:[#allocation3 + $0x10] sm:$0xff]
    %v379 = vld [vmem:[#allocation3 + $0x18] sm:$0xff]
    %v380 = vand.u32 2147483647, %v302
    %v381 = vand.u32 2147483647, %v303
    %v382 = vand.u32 2147483647, %v304
    %v383 = vand.u32 2147483647, %v305
    %vm384 = vcmp.lt.f32.partialorder %v380, 0.1
    %vm385 = vcmp.lt.f32.partialorder %v381, 0.1
    %vm386 = vcmp.lt.f32.partialorder %v382, 0.1
    %vm387 = vcmp.lt.f32.partialorder %v383, 0.1
    %v388 = vmul.f32 %v380, 0.5
    %v389 = vmul.f32 %v381, 0.5
    %v390 = vmul.f32 %v382, 0.5
    %v391 = vmul.f32 %v383, 0.5
    %v392 = vmul.f32 %v388, %v380
    %v393 = vmul.f32 %v389, %v381
    %v394 = vmul.f32 %v390, %v382
    %v395 = vmul.f32 %v391, %v383
    %v396 = vmul.f32 %v392, 10.0
    %v397 = vmul.f32 %v393, 10.0
    %v398 = vmul.f32 %v394, 10.0
    %v399 = vmul.f32 %v395, 10.0
    %v400 = vsub.f32 %v380, 0.05
    %v401 = vsub.f32 %v381, 0.05
    %v402 = vsub.f32 %v382, 0.05
    %v403 = vsub.f32 %v383, 0.05
    %v404 = vsel %vm384, %v396, %v400
    %v405 = vsel %vm385, %v397, %v401
    %v406 = vsel %vm386, %v398, %v402
    %v407 = vsel %vm387, %v399, %v403
    %v408 = vsel %vm328, %v404, 0.0
    %v409 = vsel %vm329, %v405, 0.0
    %v410 = vsel %vm330, %v406, 0.0
    %v411 = vsel %vm331, %v407, 0.0
    %v412 = vadd.f32 %v376, %v408
    %v413 = vadd.f32 %v377, %v409
    %v414 = vadd.f32 %v378, %v410
    %v415 = vadd.f32 %v379, %v411
    %416 = vst [vmem:[#allocation3] sm:$0xff] %v412
    %417 = vst [vmem:[#allocation3 + $0x8] sm:$0xff] %v413
    %418 = vst [vmem:[#allocation3 + $0x10] sm:$0xff] %v414
    %419 = vst [vmem:[#allocation3 + $0x18] sm:$0xff] %v415
    // Predicated region
    $region50: #{tpu_custom_call.1} parent=1 // pred_check
      %p420 = pneg %p171
    $region51: #{tpu_custom_call.1} parent=1 // pred_check_branch
      %422 = sbr.rel (%p420) target = $region53
    $region52: #{tpu_custom_call.1} parent=1 // pred_region
      %v423 = vld [vmem:[#allocation2] sm:$0xff]
      %v424 = vld [vmem:[#allocation2 + $0x8] sm:$0xff]
      %v425 = vld [vmem:[#allocation2 + $0x10] sm:$0xff]
      %v426 = vld [vmem:[#allocation2 + $0x18] sm:$0xff]
      %v427 = vadd.f32 %v423, %v424
      %v428 = vadd.f32 %v427, %v425
      %v429 = vadd.f32 %v428, %v426
      %430 = vadd.xlane.f32.xlu0 %v429
      %v431 = vpop.xlane.xlu0 %430
      %v432 = vrot.slane %v431, 4
      %v433 = vadd.f32 %v431, %v432
      %v434 = vrot.slane %v433, 2
      %v435 = vadd.f32 %v433, %v434
      %v436 = vrot.slane %v435, 1
      %v437 = vadd.f32 %v435, %v436
      %s438 = vtos %v437
      %s439 = scalar_lea.smem [#allocation13], 0
      %440 = sst [smem:[%s439]] %s438
      %v441 = vld [vmem:[#allocation3] sm:$0xff]
      %v442 = vld [vmem:[#allocation3 + $0x8] sm:$0xff]
      %v443 = vld [vmem:[#allocation3 + $0x10] sm:$0xff]
      %v444 = vld [vmem:[#allocation3 + $0x18] sm:$0xff]
      %v445 = vadd.f32 %v441, %v442
      %v446 = vadd.f32 %v445, %v443
      %v447 = vadd.f32 %v446, %v444
      %448 = vadd.xlane.f32.xlu0 %v447
      %v449 = vpop.xlane.xlu0 %448
      %v450 = vrot.slane %v449, 4
      %v451 = vadd.f32 %v449, %v450
      %v452 = vrot.slane %v451, 2
      %v453 = vadd.f32 %v451, %v452
      %v454 = vrot.slane %v453, 1
      %v455 = vadd.f32 %v453, %v454
      %s456 = vtos %v455
      %s457 = scalar_lea.smem [#allocation13], 1
      %458 = sst [smem:[%s457]] %s456
    $region53: #{tpu_custom_call.1} parent=1 // pred_fallthru
      _
    // Predicated region
    $region54: #{tpu_custom_call.1} parent=1 // pred_check
      _
    $region55: #{tpu_custom_call.1} parent=1 // pred_check_branch
      %460 = sbr.rel (0) target = $region57
    $region56: #{tpu_custom_call.1} parent=1 // pred_region
      %s462 = ssub.s32 16, 16
      %463 = vsyncadd [#allocation6], %s462
      %466 = dma.smem_to_hbm [#allocation13], 16, %s6, [#allocation6]
    $region57: #{tpu_custom_call.1} parent=1 // pred_fallthru
      _
    // Predicated region
    $region58: #{tpu_custom_call.1} parent=1 // pred_check
      _
    $region59: #{tpu_custom_call.1} parent=1 // pred_check_branch
      %468 = sbr.rel (0) target = $region61
    $region60: #{tpu_custom_call.1} parent=1 // pred_region
      %469 = dma.done [#allocation6], 16
    $region61: #{tpu_custom_call.1} parent=1 // pred_fallthru
      _
    %470 = sfence
    %471 = vsyncpa [#allocation5], 1
    %472 = vsyncpa [#allocation8], 1
    %473 = vsyncpa [#allocation11], 1
    %474 = vsyncpa [#allocation6], 1

</llo_original>
